<compile_context>
chip_gen: v7x
topology: tpu7x:2x2x1
jax: 0.10.0
libtpu: 0.0.40
codegen_flags: <defaults>
</compile_context>

<pallas_src>
import jax
import jax.numpy as jnp
from jax.experimental import pallas as pl
from jax.experimental.pallas import tpu as pltpu

IN1, OUT1 = 100, 128     # fc1: Linear(100, 128)
IN2, OUT2 = 128, 100     # fc2: Linear(128, 100)

KP = 128                 # padded contraction dim for fc1 (100 -> 128)
N1P = 128                # fc1 output width (already lane-aligned)
N2P = 128                # padded fc2 output (100 -> 128), lane-dense store


def mlp_kernel(x_ref, w1_ref, b1_ref, w2_ref, b2_ref, o_ref):
    # fc1: (tile_b,128) @ (128,128) + (1,128) -> relu. Zero-padded K contributes 0.
    h = jnp.dot(x_ref[...], w1_ref[...], preferred_element_type=jnp.float32)
    h = jnp.maximum(h + b1_ref[...], 0.0)
    # fc2: (tile_b,128) @ (128,128) + (1,128) -> relu. Padded output cols are exactly 0.
    # (On v6e/v7x at large batch, casting x/h and the weights to bf16 for the MXU
    #  while keeping bias+ReLU in f32 would roughly double MXU throughput.)
    y = jnp.dot(h, w2_ref[...], preferred_element_type=jnp.float32)
    y = jnp.maximum(y + b2_ref[...], 0.0)
    o_ref[...] = y.astype(o_ref.dtype)


def _round_up(n, m):
    return ((n + m - 1) // m) * m


def pad_params(w1, b1, w2, b2):
    """Pad/cast parameters ONCE (outside the per-call path).

    w1: (100,128), b1: (128,), w2: (128,100), b2: (100,)  [stored as (in, out)]
    Returns zero-padded f32 tensors of shapes (128,128), (1,128), (128,128), (1,128).
    """
    w1_p = jnp.zeros((KP, N1P), jnp.float32).at[:IN1, :OUT1].set(w1.astype(jnp.float32))
    b1_p = jnp.zeros((1, N1P), jnp.float32).at[0, :OUT1].set(b1.astype(jnp.float32))
    w2_p = jnp.zeros((N1P, N2P), jnp.float32).at[:IN2, :OUT2].set(w2.astype(jnp.float32))
    b2_p = jnp.zeros((1, N2P), jnp.float32).at[0, :OUT2].set(b2.astype(jnp.float32))
    return w1_p, b1_p, w2_p, b2_p


@jax.jit
def net_forward(x, w1_p, b1_p, w2_p, b2_p):
    """Forward pass of Net: flatten -> fc1 -> relu -> fc2 -> relu.

    x: (B, ...) with prod(shape[1:]) == 100. Parameters must be pre-padded via
    pad_params. Returns (B, 100) float32. Entire pad -> pallas_call -> slice is
    one jit region (single dispatch).
    """
    B = x.shape[0]
    feat = 1
    for s in x.shape[1:]:
        feat *= s
    assert feat == IN1, f"num_flat_features must be {IN1}, got {feat}"
    x2d = x.reshape(B, feat).astype(jnp.float32)

    # Row tile: whole (padded) batch for small B; 256-row tiles + parallel grid
    # for large B (uses v7x's 2nd TensorCore; ignored on single-TC v5e/v6e).
    if B <= 512:
        tile_b = _round_up(B, 8)
    else:
        tile_b = 256
    Bp = _round_up(B, tile_b)
    grid = (Bp // tile_b,)

    # Zero-pad x to (Bp, 128). Padding is exact: extra K columns contribute 0
    # to the contraction; extra rows are sliced off below.
    x_p = jnp.zeros((Bp, KP), jnp.float32).at[:B, :feat].set(x2d)

    flops = 2 * Bp * (KP * N1P + N1P * N2P)
    bytes_accessed = 4 * (Bp * KP + KP * N1P + N1P + N1P * N2P + N2P + Bp * N2P)

    out_p = pl.pallas_call(
        mlp_kernel,
        out_shape=jax.ShapeDtypeStruct((Bp, N2P), jnp.float32),
        grid=grid,
        in_specs=[
            pl.BlockSpec((tile_b, KP), lambda i: (i, 0)),   # x tile per grid step
            pl.BlockSpec((KP, N1P), lambda i: (0, 0)),      # w1 resident
            pl.BlockSpec((1, N1P), lambda i: (0, 0)),       # b1 resident
            pl.BlockSpec((N1P, N2P), lambda i: (0, 0)),     # w2 resident
            pl.BlockSpec((1, N2P), lambda i: (0, 0)),       # b2 resident
        ],
        out_specs=pl.BlockSpec((tile_b, N2P), lambda i: (i, 0)),
        compiler_params=pltpu.CompilerParams(
            dimension_semantics=("parallel",)),
        cost_estimate=pl.CostEstimate(
            flops=flops, transcendentals=0, bytes_accessed=bytes_accessed),
    )(x_p, w1_p, b1_p, w2_p, b2_p)

    # Padded rows contain relu(relu(b1)@w2+b2) garbage; padded cols are exact 0.
    # Slice both off before returning.
    return out_p[:B, :OUT2]


def init_params(key):
    """Deterministic init mimicking torch.nn.Linear default (U[-1/sqrt(fan_in), +])."""
    k1, k2, k3, k4 = jax.random.split(key, 4)
    bound1 = 1.0 / jnp.sqrt(IN1)
    bound2 = 1.0 / jnp.sqrt(IN2)
    # stored as (in, out) so the kernel computes x @ W
    w1 = jax.random.uniform(k1, (IN1, OUT1), jnp.float32, -bound1, bound1)
    b1 = jax.random.uniform(k2, (OUT1,), jnp.float32, -bound1, bound1)
    w2 = jax.random.uniform(k3, (IN2, OUT2), jnp.float32, -bound2, bound2)
    b2 = jax.random.uniform(k4, (OUT2,), jnp.float32, -bound2, bound2)
    return w1, b1, w2, b2


def _reference(x, w1, b1, w2, b2):
    x2d = x.reshape(x.shape[0], -1).astype(jnp.float32)
    return jnp.maximum(jnp.maximum(x2d @ w1 + b1, 0.0) @ w2 + b2, 0.0)


if __name__ == "__main__":
    key = jax.random.PRNGKey(0)
    k_in, k_param, k_big = jax.random.split(key, 3)

    # input consistent with num_flat_features == 100: (B=2, C=4, H=5, W=5)
    x = jax.random.normal(k_in, (2, 4, 5, 5), dtype=jnp.float32)
    w1, b1, w2, b2 = init_params(k_param)

    # Pad parameters ONCE, outside the per-call path.
    w1_p, b1_p, w2_p, b2_p = pad_params(w1, b1, w2, b2)

    out = net_forward(x, w1_p, b1_p, w2_p, b2_p)
    out = jax.block_until_ready(out)

    ref = _reference(x, w1, b1, w2, b2)
    assert out.shape == (2, 100)
    assert jnp.allclose(out, ref, atol=1e-5, rtol=1e-5)

    # Exercise the batched / gridded path (B=600 -> tile_b=256, grid=(3,)).
    x_big = jax.random.normal(k_big, (600, 100), dtype=jnp.float32)
    out_big = jax.block_until_ready(net_forward(x_big, w1_p, b1_p, w2_p, b2_p))
    ref_big = _reference(x_big, w1, b1, w2, b2)
    assert out_big.shape == (600, 100)
    assert jnp.allclose(out_big, ref_big, atol=1e-4, rtol=1e-5)

    print("KERNEL_OK")
</pallas_src>

<mosaic_0001>
module attributes {stable_mosaic.version = 11 : i64} {
  func.func @mlp_kernel(%arg0: i32, %arg1: memref<8x128xf32, #tpu.memory_space<vmem>>, %arg2: memref<128x128xf32, #tpu.memory_space<vmem>>, %arg3: memref<1x128xf32, #tpu.memory_space<vmem>>, %arg4: memref<128x128xf32, #tpu.memory_space<vmem>>, %arg5: memref<1x128xf32, #tpu.memory_space<vmem>>, %arg6: memref<8x128xf32, #tpu.memory_space<vmem>>) attributes {dimension_semantics = [#tpu.dimension_semantics<parallel>], iteration_bounds = array<i64: 1>, scalar_prefetch = 0 : i64, scratch_operands = 0 : i64, tpu.core_type = #tpu.core_type<tc>, window_params = [{transform_indices = @transform_0, window_bounds = array<i64: 8, 128>}, {pipeline_mode = #tpu.pipeline_mode<synchronous>, transform_indices = @transform_1, window_bounds = array<i64: 128, 128>}, {pipeline_mode = #tpu.pipeline_mode<synchronous>, transform_indices = @transform_2, window_bounds = array<i64: 1, 128>}, {pipeline_mode = #tpu.pipeline_mode<synchronous>, transform_indices = @transform_3, window_bounds = array<i64: 128, 128>}, {pipeline_mode = #tpu.pipeline_mode<synchronous>, transform_indices = @transform_4, window_bounds = array<i64: 1, 128>}, {transform_indices = @transform_5, window_bounds = array<i64: 8, 128>}]} {
    %c0 = arith.constant 0 : index
    %c0_0 = arith.constant 0 : index
    %0 = vector.load %arg1[%c0, %c0_0] : memref<8x128xf32, #tpu.memory_space<vmem>>, vector<8x128xf32>
    %c0_1 = arith.constant 0 : index
    %c0_2 = arith.constant 0 : index
    %1 = vector.load %arg2[%c0_1, %c0_2] : memref<128x128xf32, #tpu.memory_space<vmem>>, vector<128x128xf32>
    %cst = arith.constant dense<0.000000e+00> : vector<8x128xf32>
    %2 = tpu.matmul %0, %1, %cst {dimension_numbers = #tpu.dot_dimension_numbers<[1], [0], [0], [1], [0, 0, 1, 1], [], []>} : vector<8x128xf32>, vector<128x128xf32>, vector<8x128xf32> -> vector<8x128xf32>
    %c0_3 = arith.constant 0 : index
    %c0_4 = arith.constant 0 : index
    %3 = vector.load %arg3[%c0_3, %c0_4] : memref<1x128xf32, #tpu.memory_space<vmem>>, vector<1x128xf32>
    %4 = vector.broadcast %3 : vector<1x128xf32> to vector<8x128xf32>
    %5 = arith.addf %2, %4 : vector<8x128xf32>
    %cst_5 = arith.constant 0.000000e+00 : f32
    %6 = vector.broadcast %cst_5 : f32 to vector<8x128xf32>
    %7 = arith.maximumf %5, %6 : vector<8x128xf32>
    %c0_6 = arith.constant 0 : index
    %c0_7 = arith.constant 0 : index
    %8 = vector.load %arg4[%c0_6, %c0_7] : memref<128x128xf32, #tpu.memory_space<vmem>>, vector<128x128xf32>
    %cst_8 = arith.constant dense<0.000000e+00> : vector<8x128xf32>
    %9 = tpu.matmul %7, %8, %cst_8 {dimension_numbers = #tpu.dot_dimension_numbers<[1], [0], [0], [1], [0, 0, 1, 1], [], []>} : vector<8x128xf32>, vector<128x128xf32>, vector<8x128xf32> -> vector<8x128xf32>
    %c0_9 = arith.constant 0 : index
    %c0_10 = arith.constant 0 : index
    %10 = vector.load %arg5[%c0_9, %c0_10] : memref<1x128xf32, #tpu.memory_space<vmem>>, vector<1x128xf32>
    %11 = vector.broadcast %10 : vector<1x128xf32> to vector<8x128xf32>
    %12 = arith.addf %9, %11 : vector<8x128xf32>
    %cst_11 = arith.constant 0.000000e+00 : f32
    %13 = vector.broadcast %cst_11 : f32 to vector<8x128xf32>
    %14 = arith.maximumf %12, %13 : vector<8x128xf32>
    %c0_12 = arith.constant 0 : index
    %c0_13 = arith.constant 0 : index
    %15 = vector.load %arg6[%c0_12, %c0_13] : memref<8x128xf32, #tpu.memory_space<vmem>>, vector<8x128xf32>
    tpu.vector_store %arg6[%c0_12, %c0_13], %14 {strides = array<i32>} : memref<8x128xf32, #tpu.memory_space<vmem>>, vector<8x128xf32>,
    return
  }
  func.func @transform_0(%arg0: i32) -> (i32, i32) {
    %c0_i32 = arith.constant 0 : i32
    %c0_i32_0 = arith.constant 0 : i32
    return %arg0, %c0_i32 : i32, i32
  }
  func.func @transform_1(%arg0: i32) -> (i32, i32) {
    %c0_i32 = arith.constant 0 : i32
    %c0_i32_0 = arith.constant 0 : i32
    %c0_i32_1 = arith.constant 0 : i32
    return %c0_i32, %c0_i32_0 : i32, i32
  }
  func.func @transform_2(%arg0: i32) -> (i32, i32) {
    %c0_i32 = arith.constant 0 : i32
    %c0_i32_0 = arith.constant 0 : i32
    %c0_i32_1 = arith.constant 0 : i32
    return %c0_i32, %c0_i32_0 : i32, i32
  }
  func.func @transform_3(%arg0: i32) -> (i32, i32) {
    %c0_i32 = arith.constant 0 : i32
    %c0_i32_0 = arith.constant 0 : i32
    %c0_i32_1 = arith.constant 0 : i32
    return %c0_i32, %c0_i32_0 : i32, i32
  }
  func.func @transform_4(%arg0: i32) -> (i32, i32) {
    %c0_i32 = arith.constant 0 : i32
    %c0_i32_0 = arith.constant 0 : i32
    %c0_i32_1 = arith.constant 0 : i32
    return %c0_i32, %c0_i32_0 : i32, i32
  }
  func.func @transform_5(%arg0: i32) -> (i32, i32) {
    %c0_i32 = arith.constant 0 : i32
    %c0_i32_0 = arith.constant 0 : i32
    return %arg0, %c0_i32 : i32, i32
  }
}

</mosaic_0001>

<llo_original>
// kernel: net_forward.1
$region0: #{net_forward.1}
  #allocation0 [shape = 'u32[]', space=smem, size = 0x4, offset = 0x4, fixed_abs, tag = 'smem constant byte address 0x4 - core index']
  #allocation1 [shape = 'u32[144,128]{1,0:T(1,128)}', space=vmem, size = 0x12000, scoped, tag = 'internal scratch']
  %s0 = inlined_call_operand.vmem [shape: f32[8,128], index: 0, kind: input, shape index: {}]
  %s1 = inlined_call_operand.vmem [shape: f32[128,128], index: 1, kind: input, shape index: {}]
  %s2 = inlined_call_operand.vmem [shape: f32[1,128], index: 2, kind: input, shape index: {}]
  %s3 = inlined_call_operand.hbm [shape: f32[128,128], index: 3, kind: input, shape index: {}]
  %s4 = inlined_call_operand.vmem [shape: f32[1,128], index: 4, kind: input, shape index: {}]
  %s5 = inlined_call_operand.vmem [shape: f32[8,128], index: 5, kind: output, shape index: {}]
  %s6 = sld [smem:[#allocation0]]
  $region34: #{net_forward.1} parent=0
    _
  %s8 = ssub.s32 1, %s6
  %s9 = scalar_select 0, %s8, %s6
  $region1: #{net_forward.1} parent=0
    #allocation2 [shape = 'u8[65536]{0}', space=vmem, size = 0x10000, scoped, tag = 'input window, operand 3, single buffered']
    #allocation3 [shape = 's32[1]{0}', space=sflag, size = 0x4, scoped, tag = 'scoped memory for net_forward.1']
    %10 = vsyncpa [#allocation3], 0
    // Predicated region
    $region2: #{net_forward.1} parent=1 // pred_check
      _
    $region3: #{net_forward.1} parent=1 // pred_check_branch
      %12 = sbr.rel (0) target = $region5
    $region4: #{net_forward.1} parent=1 // pred_region
      _
    $region5: #{net_forward.1} parent=1 // pred_fallthru
      _
    // Predicated region
    $region6: #{net_forward.1} parent=1 // pred_check
      _
    $region7: #{net_forward.1} parent=1 // pred_check_branch
      %14 = sbr.rel (0) target = $region9
    $region8: #{net_forward.1} parent=1 // pred_region
      _
    $region9: #{net_forward.1} parent=1 // pred_fallthru
      _
    // Predicated region
    $region10: #{net_forward.1} parent=1 // pred_check
      _
    $region11: #{net_forward.1} parent=1 // pred_check_branch
      %16 = sbr.rel (0) target = $region13
    $region12: #{net_forward.1} parent=1 // pred_region
      _
    $region13: #{net_forward.1} parent=1 // pred_fallthru
      _
    // Predicated region
    $region14: #{net_forward.1} parent=1 // pred_check
      _
    $region15: #{net_forward.1} parent=1 // pred_check_branch
      %18 = sbr.rel (0) target = $region17
    $region16: #{net_forward.1} parent=1 // pred_region
      %s20 = ssub.s32 2048, 2048
      %21 = vsyncadd [#allocation3], %s20
      %s22 = sshll.u32 [#allocation2], 4
      %s23 = int_to_ptr.vmem [resolvable:$true] %s22
      %28 = dma.hbm_to_vmem [thread:$0]  %s3, 2048, %s23, [#allocation3], 128, 128, 8
    $region17: #{net_forward.1} parent=1 // pred_fallthru
      _
    // Predicated region
    $region18: #{net_forward.1} parent=1 // pred_check
      _
    $region19: #{net_forward.1} parent=1 // pred_check_branch
      %30 = sbr.rel (0) target = $region21
    $region20: #{net_forward.1} parent=1 // pred_region
      _
    $region21: #{net_forward.1} parent=1 // pred_fallthru
      _
    // Predicated region
    $region22: #{net_forward.1} parent=1 // pred_check
      _
    $region23: #{net_forward.1} parent=1 // pred_check_branch
      %32 = sbr.rel (0) target = $region25
    $region24: #{net_forward.1} parent=1 // pred_region
      %33 = dma.done [#allocation3], 2048
    $region25: #{net_forward.1} parent=1 // pred_fallthru
      _
    %v34 = vld [vmem:[%s0] sm:$0xff]
    %v35 = vld [vmem:[%s1] sm:$0xff]
    %v36 = vld [vmem:[%s1 + $0x8] sm:$0xff]
    %v37 = vld [vmem:[%s1 + $0x10] sm:$0xff]
    %v38 = vld [vmem:[%s1 + $0x18] sm:$0xff]
    %v39 = vld [vmem:[%s1 + $0x20] sm:$0xff]
    %v40 = vld [vmem:[%s1 + $0x28] sm:$0xff]
    %v41 = vld [vmem:[%s1 + $0x30] sm:$0xff]
    %v42 = vld [vmem:[%s1 + $0x38] sm:$0xff]
    %v43 = vld [vmem:[%s1 + $0x40] sm:$0xff]
    %v44 = vld [vmem:[%s1 + $0x48] sm:$0xff]
    %v45 = vld [vmem:[%s1 + $0x50] sm:$0xff]
    %v46 = vld [vmem:[%s1 + $0x58] sm:$0xff]
    %v47 = vld [vmem:[%s1 + $0x60] sm:$0xff]
    %v48 = vld [vmem:[%s1 + $0x68] sm:$0xff]
    %v49 = vld [vmem:[%s1 + $0x70] sm:$0xff]
    %v50 = vld [vmem:[%s1 + $0x78] sm:$0xff]
    %v51 = vld [vmem:[%s2] sm:$0x1]
    %v53 = vlaneseq
    %v54 = vshrl.u32 %v53, 7
    %v55 = vsub.s32 0, %v54
    %v56 = vrot.slane %v51, %v55
    %58 = vmatprep.subr.mxu0 0.0
    %59 = vmatpush1.msra.mxu0 %v35
    %60 = vmatprep.subr.mxu0 0.0
    %61 = vmatpush1.msra.mxu0 %v36
    %62 = vmatprep.subr.mxu0 0.0
    %63 = vmatpush1.msra.mxu0 %v37
    %64 = vmatprep.subr.mxu0 0.0
    %65 = vmatpush1.msra.mxu0 %v38
    %66 = vmatprep.subr.mxu0 0.0
    %67 = vmatpush1.msra.mxu0 %v39
    %68 = vmatprep.subr.mxu0 0.0
    %69 = vmatpush1.msra.mxu0 %v40
    %70 = vmatprep.subr.mxu0 0.0
    %71 = vmatpush1.msra.mxu0 %v41
    %72 = vmatprep.subr.mxu0 0.0
    %73 = vmatpush1.msra.mxu0 %v42
    %74 = vmatprep.subr.mxu0 0.0
    %75 = vmatpush1.msra.mxu0 %v43
    %76 = vmatprep.subr.mxu0 0.0
    %77 = vmatpush1.msra.mxu0 %v44
    %78 = vmatprep.subr.mxu0 0.0
    %79 = vmatpush1.msra.mxu0 %v45
    %80 = vmatprep.subr.mxu0 0.0
    %81 = vmatpush1.msra.mxu0 %v46
    %82 = vmatprep.subr.mxu0 0.0
    %83 = vmatpush1.msra.mxu0 %v47
    %84 = vmatprep.subr.mxu0 0.0
    %85 = vmatpush1.msra.mxu0 %v48
    %86 = vmatprep.subr.mxu0 0.0
    %87 = vmatpush1.msra.mxu0 %v49
    %88 = vmatprep.subr.mxu0 0.0
    %89 = vmatpush1.msra.mxu0 %v50
    %90 = vmatprep.subr.mxu0 0.0
    %91 = vmatpush1.msra.mxu0 0.0
    %92 = vmatprep.subr.mxu0 0.0
    %93 = vmatpush1.msra.mxu0 0.0
    %94 = vmatprep.subr.mxu0 0.0
    %95 = vmatpush1.msra.mxu0 0.0
    %96 = vmatprep.subr.mxu0 0.0
    %97 = vmatpush1.msra.mxu0 0.0
    %98 = vmatprep.subr.mxu0 0.0
    %99 = vmatpush1.msra.mxu0 0.0
    %100 = vmatprep.subr.mxu0 0.0
    %101 = vmatpush1.msra.mxu0 0.0
    %102 = vmatprep.subr.mxu0 0.0
    %103 = vmatpush1.msra.mxu0 0.0
    %104 = vmatprep.subr.mxu0 0.0
    %105 = vmatpush1.msra.mxu0 0.0
    %106 = vmatprep.subr.mxu0 0.0
    %107 = vmatpush1.msra.mxu0 0.0
    %108 = vmatprep.subr.mxu0 0.0
    %109 = vmatpush1.msra.mxu0 0.0
    %110 = vmatprep.subr.mxu0 0.0
    %111 = vmatpush1.msra.mxu0 0.0
    %112 = vmatprep.subr.mxu0 0.0
    %113 = vmatpush1.msra.mxu0 0.0
    %114 = vmatprep.subr.mxu0 0.0
    %115 = vmatpush1.msra.mxu0 0.0
    %116 = vmatprep.subr.mxu0 0.0
    %117 = vmatpush1.msra.mxu0 0.0
    %118 = vmatprep.subr.mxu0 0.0
    %119 = vmatpush1.msra.mxu0 0.0
    %120 = vmatprep.subr.mxu0 0.0
    %121 = vmatpush1.msra.mxu0 0.0
    %122 = vmatprep.mubr.f32.mxu0 0.0
    %123 = vmatmul.mubr.f32.gmra.mrb[0].mxu0 %v34
    %v124 = vpop.f32.mrb[0].mxu0
    %v125 = vadd.f32 %v56, %v124
    %v126 = vpop.f32.mrb[0].mxu0
    %127 = vdwg.mxu0
    %v128 = vmax.f32 %v125, 0.0
    %v129 = vld [vmem:[#allocation2] sm:$0xff]
    %v130 = vld [vmem:[#allocation2 + $0x8] sm:$0xff]
    %v131 = vld [vmem:[#allocation2 + $0x10] sm:$0xff]
    %v132 = vld [vmem:[#allocation2 + $0x18] sm:$0xff]
    %v133 = vld [vmem:[#allocation2 + $0x20] sm:$0xff]
    %v134 = vld [vmem:[#allocation2 + $0x28] sm:$0xff]
    %v135 = vld [vmem:[#allocation2 + $0x30] sm:$0xff]
    %v136 = vld [vmem:[#allocation2 + $0x38] sm:$0xff]
    %v137 = vld [vmem:[#allocation2 + $0x40] sm:$0xff]
    %v138 = vld [vmem:[#allocation2 + $0x48] sm:$0xff]
    %v139 = vld [vmem:[#allocation2 + $0x50] sm:$0xff]
    %v140 = vld [vmem:[#allocation2 + $0x58] sm:$0xff]
    %v141 = vld [vmem:[#allocation2 + $0x60] sm:$0xff]
    %v142 = vld [vmem:[#allocation2 + $0x68] sm:$0xff]
    %v143 = vld [vmem:[#allocation2 + $0x70] sm:$0xff]
    %v144 = vld [vmem:[#allocation2 + $0x78] sm:$0xff]
    %v145 = vld [vmem:[%s4] sm:$0x1]
    %v147 = vlaneseq
    %v148 = vshrl.u32 %v147, 7
    %v149 = vsub.s32 0, %v148
    %v150 = vrot.slane %v145, %v149
    %152 = vmatprep.subr.mxu0 0.0
    %153 = vmatpush1.msra.mxu0 %v129
    %154 = vmatprep.subr.mxu0 0.0
    %155 = vmatpush1.msra.mxu0 %v130
    %156 = vmatprep.subr.mxu0 0.0
    %157 = vmatpush1.msra.mxu0 %v131
    %158 = vmatprep.subr.mxu0 0.0
    %159 = vmatpush1.msra.mxu0 %v132
    %160 = vmatprep.subr.mxu0 0.0
    %161 = vmatpush1.msra.mxu0 %v133
    %162 = vmatprep.subr.mxu0 0.0
    %163 = vmatpush1.msra.mxu0 %v134
    %164 = vmatprep.subr.mxu0 0.0
    %165 = vmatpush1.msra.mxu0 %v135
    %166 = vmatprep.subr.mxu0 0.0
    %167 = vmatpush1.msra.mxu0 %v136
    %168 = vmatprep.subr.mxu0 0.0
    %169 = vmatpush1.msra.mxu0 %v137
    %170 = vmatprep.subr.mxu0 0.0
    %171 = vmatpush1.msra.mxu0 %v138
    %172 = vmatprep.subr.mxu0 0.0
    %173 = vmatpush1.msra.mxu0 %v139
    %174 = vmatprep.subr.mxu0 0.0
    %175 = vmatpush1.msra.mxu0 %v140
    %176 = vmatprep.subr.mxu0 0.0
    %177 = vmatpush1.msra.mxu0 %v141
    %178 = vmatprep.subr.mxu0 0.0
    %179 = vmatpush1.msra.mxu0 %v142
    %180 = vmatprep.subr.mxu0 0.0
    %181 = vmatpush1.msra.mxu0 %v143
    %182 = vmatprep.subr.mxu0 0.0
    %183 = vmatpush1.msra.mxu0 %v144
    %184 = vmatprep.subr.mxu0 0.0
    %185 = vmatpush1.msra.mxu0 0.0
    %186 = vmatprep.subr.mxu0 0.0
    %187 = vmatpush1.msra.mxu0 0.0
    %188 = vmatprep.subr.mxu0 0.0
    %189 = vmatpush1.msra.mxu0 0.0
    %190 = vmatprep.subr.mxu0 0.0
    %191 = vmatpush1.msra.mxu0 0.0
    %192 = vmatprep.subr.mxu0 0.0
    %193 = vmatpush1.msra.mxu0 0.0
    %194 = vmatprep.subr.mxu0 0.0
    %195 = vmatpush1.msra.mxu0 0.0
    %196 = vmatprep.subr.mxu0 0.0
    %197 = vmatpush1.msra.mxu0 0.0
    %198 = vmatprep.subr.mxu0 0.0
    %199 = vmatpush1.msra.mxu0 0.0
    %200 = vmatprep.subr.mxu0 0.0
    %201 = vmatpush1.msra.mxu0 0.0
    %202 = vmatprep.subr.mxu0 0.0
    %203 = vmatpush1.msra.mxu0 0.0
    %204 = vmatprep.subr.mxu0 0.0
    %205 = vmatpush1.msra.mxu0 0.0
    %206 = vmatprep.subr.mxu0 0.0
    %207 = vmatpush1.msra.mxu0 0.0
    %208 = vmatprep.subr.mxu0 0.0
    %209 = vmatpush1.msra.mxu0 0.0
    %210 = vmatprep.subr.mxu0 0.0
    %211 = vmatpush1.msra.mxu0 0.0
    %212 = vmatprep.subr.mxu0 0.0
    %213 = vmatpush1.msra.mxu0 0.0
    %214 = vmatprep.subr.mxu0 0.0
    %215 = vmatpush1.msra.mxu0 0.0
    %216 = vmatprep.mubr.f32.mxu0 0.0
    %217 = vmatmul.mubr.f32.gmra.mrb[0].mxu0 %v128
    %v218 = vpop.f32.mrb[0].mxu0
    %v219 = vadd.f32 %v150, %v218
    %v220 = vpop.f32.mrb[0].mxu0
    %221 = vdwg.mxu0
    %v222 = vmax.f32 %v219, 0.0
    %223 = vst [vmem:[%s5] sm:$0xff] %v222
    // Predicated region
    $region26: #{net_forward.1} parent=1 // pred_check
      _
    $region27: #{net_forward.1} parent=1 // pred_check_branch
      %225 = sbr.rel (0) target = $region29
    $region28: #{net_forward.1} parent=1 // pred_region
      _
    $region29: #{net_forward.1} parent=1 // pred_fallthru
      _
    // Predicated region
    $region30: #{net_forward.1} parent=1 // pred_check
      _
    $region31: #{net_forward.1} parent=1 // pred_check_branch
      %227 = sbr.rel (0) target = $region33
    $region32: #{net_forward.1} parent=1 // pred_region
      _
    $region33: #{net_forward.1} parent=1 // pred_fallthru
      _
    %228 = vsyncpa [#allocation3], 1

</llo_original>
